<compile_context>
chip_gen: v5e
topology: v5e:2x2
jax: 0.10.0
libtpu: 0.0.40
codegen_flags: <defaults>
</compile_context>

<pallas_src>
import math

import jax
import jax.numpy as jnp
from jax.experimental import pallas as pl
from jax.experimental.pallas import tpu as pltpu


def _diag_scale_kernel(x_ref, w_ref, o_ref):
    # x @ diag(w) == per-column scale: pure VPU elementwise multiply.
    o_ref[...] = x_ref[...] * w_ref[...]


def _choose_row_tile(n_rows, lanes, itemsize, sublane, target_block_bytes):
    # Largest sublane-aligned row tile whose block stays near the target size.
    rows = max(sublane, target_block_bytes // (lanes * itemsize))
    rows -= rows % sublane
    if rows >= n_rows:
        return n_rows  # single block == whole array (block dim == array dim is legal)
    return rows


def diaglinear_forward(x, weight, *, target_block_bytes=4 * 1024 * 1024):
    """x: (..., dimA), weight: (dimA,). Returns x @ diag(weight)."""
    dimA = weight.shape[0]
    assert x.shape[-1] == dimA, "last dim of x must equal dimA"

    orig_shape = x.shape
    dtype = x.dtype
    weight = weight.astype(dtype)            # avoid mixed-dtype promotion in-kernel
    itemsize = dtype.itemsize
    sublane = max(8, 32 // itemsize)         # 8 (f32) / 16 (bf16) / 32 (int8)

    total = x.size
    pad_elems = 0

    if dimA % 128 == 0:
        # Already lane-dense: keep the natural (rows, dimA) layout.
        lanes = dimA
        x2d = x.reshape(-1, dimA)
        w_row = weight.reshape(1, dimA)
    else:
        # Lane-dense repack: rows of L = lcm(dimA, 128) lanes; tile weight to match.
        lanes = math.lcm(dimA, 128)
        reps = lanes // dimA
        pad_elems = (-total) % lanes
        flat = x.reshape(-1)
        if pad_elems:
            flat = jnp.concatenate([flat, jnp.zeros((pad_elems,), dtype)])
        x2d = flat.reshape(-1, lanes)
        w_row = jnp.tile(weight, reps).reshape(1, lanes)

    n_rows = x2d.shape[0]
    row_tile = _choose_row_tile(n_rows, lanes, itemsize, sublane, target_block_bytes)
    grid = (pl.cdiv(n_rows, row_tile),)      # ragged last block handled by Pallas

    block_bytes = row_tile * lanes * itemsize
    # (in + out) x 2 double-buffers plus slack; safe on v7x's 64 MiB VMEM too.
    vmem_limit = min(48 * 1024 * 1024,
                     max(16 * 1024 * 1024, 4 * block_bytes + (8 << 20)))

    cost = pl.CostEstimate(
        flops=int(n_rows) * int(lanes),
        transcendentals=0,
        bytes_accessed=2 * int(n_rows) * int(lanes) * itemsize + int(lanes) * itemsize,
    )

    out = pl.pallas_call(
        _diag_scale_kernel,
        out_shape=jax.ShapeDtypeStruct((n_rows, lanes), dtype),
        grid_spec=pltpu.PrefetchScalarGridSpec(
            num_scalar_prefetch=0,
            grid=grid,
            in_specs=[
                pl.BlockSpec((row_tile, lanes), lambda i: (i, 0)),
                pl.BlockSpec((1, lanes), lambda i: (0, 0)),
            ],
            out_specs=pl.BlockSpec((row_tile, lanes), lambda i: (i, 0)),
        ),
        compiler_params=pltpu.CompilerParams(
            dimension_semantics=("parallel",),
            vmem_limit_bytes=vmem_limit,
        ),
        cost_estimate=cost,
    )(x2d, w_row)

    if pad_elems:
        out = out.reshape(-1)[:total]
    return out.reshape(orig_shape)


if __name__ == "__main__":
    key = jax.random.PRNGKey(0)
    k1, k2, k3 = jax.random.split(key, 3)

    # Module: diaglinear_layer(dimA=32) with weight = ones(dimA); x: (2, 8, 32).
    dimA = 32
    weight = jnp.ones((dimA,), dtype=jnp.float32)  # matches torch.ones init
    x = jax.random.normal(k1, (2, 8, dimA), dtype=jnp.float32)

    y = jax.block_until_ready(diaglinear_forward(x, weight))
    y_ref = x @ jnp.diag(weight)
    assert y.shape == x.shape
    assert jnp.allclose(y, y_ref, atol=1e-6, rtol=1e-6)

    # Extra checks: non-trivial weight, lane-repack padding path, and a
    # multi-block ragged grid (small target block forces several tiles).
    w2 = jax.random.normal(k2, (dimA,), dtype=jnp.float32)
    x2 = jax.random.normal(k3, (41, 33, dimA), dtype=jnp.float32)
    y2 = jax.block_until_ready(
        diaglinear_forward(x2, w2, target_block_bytes=64 * 1024))
    y2_ref = x2 @ jnp.diag(w2)
    assert jnp.allclose(y2, y2_ref, atol=1e-6, rtol=1e-6)

    print("KERNEL_OK")
</pallas_src>

<mosaic_0001>
module attributes {stable_mosaic.version = 11 : i64} {
  func.func @_diag_scale_kernel(%arg0: i32, %arg1: memref<4x128xf32, #tpu.memory_space<vmem>>, %arg2: memref<1x128xf32, #tpu.memory_space<vmem>>, %arg3: memref<4x128xf32, #tpu.memory_space<vmem>>) attributes {dimension_semantics = [#tpu.dimension_semantics<parallel>], iteration_bounds = array<i64: 1>, scalar_prefetch = 0 : i64, scratch_operands = 0 : i64, tpu.core_type = #tpu.core_type<tc>, window_params = [{transform_indices = @transform_0, window_bounds = array<i64: 4, 128>}, {pipeline_mode = #tpu.pipeline_mode<synchronous>, transform_indices = @transform_1, window_bounds = array<i64: 1, 128>}, {transform_indices = @transform_2, window_bounds = array<i64: 4, 128>}]} {
    %c0 = arith.constant 0 : index
    %c0_0 = arith.constant 0 : index
    %0 = vector.load %arg1[%c0, %c0_0] : memref<4x128xf32, #tpu.memory_space<vmem>>, vector<4x128xf32>
    %c0_1 = arith.constant 0 : index
    %c0_2 = arith.constant 0 : index
    %1 = vector.load %arg2[%c0_1, %c0_2] : memref<1x128xf32, #tpu.memory_space<vmem>>, vector<1x128xf32>
    %2 = vector.broadcast %1 : vector<1x128xf32> to vector<4x128xf32>
    %3 = arith.mulf %0, %2 : vector<4x128xf32>
    %c0_3 = arith.constant 0 : index
    %c0_4 = arith.constant 0 : index
    %4 = vector.load %arg3[%c0_3, %c0_4] : memref<4x128xf32, #tpu.memory_space<vmem>>, vector<4x128xf32>
    tpu.vector_store %arg3[%c0_3, %c0_4], %3 {strides = array<i32>} : memref<4x128xf32, #tpu.memory_space<vmem>>, vector<4x128xf32>,
    return
  }
  func.func @transform_0(%arg0: i32) -> (i32, i32) {
    %c0_i32 = arith.constant 0 : i32
    %c0_i32_0 = arith.constant 0 : i32
    return %arg0, %c0_i32 : i32, i32
  }
  func.func @transform_1(%arg0: i32) -> (i32, i32) {
    %c0_i32 = arith.constant 0 : i32
    %c0_i32_0 = arith.constant 0 : i32
    %c0_i32_1 = arith.constant 0 : i32
    return %c0_i32, %c0_i32_0 : i32, i32
  }
  func.func @transform_2(%arg0: i32) -> (i32, i32) {
    %c0_i32 = arith.constant 0 : i32
    %c0_i32_0 = arith.constant 0 : i32
    return %arg0, %c0_i32 : i32, i32
  }
}

</mosaic_0001>

<llo_original>
// kernel: tpu_custom_call.1
$region0: #{tpu_custom_call.1}
  #allocation0 [shape = 'u32[]', space=smem, size = 0x4, offset = 0x4, fixed_abs, tag = 'smem constant byte address 0x4 - core index']
  #allocation1 [shape = 'u32[72,128]{1,0:T(1,128)}', space=vmem, size = 0x9000, scoped, tag = 'internal scratch']
  %s0 = inlined_call_operand.hbm [shape: f32[4,128], index: 0, kind: input, shape index: {}]
  %s1 = inlined_call_operand.hbm [shape: f32[1,128], index: 1, kind: input, shape index: {}]
  %s2 = inlined_call_operand.hbm [shape: f32[4,128], index: 2, kind: output, shape index: {}]
  %s3 = sld [smem:[#allocation0]]
  $region26: #{tpu_custom_call.1} parent=0
    _
  %s5 = ssub.s32 1, %s3
  %s6 = scalar_select 0, %s5, %s3
  $region1: #{tpu_custom_call.1} parent=0
    #allocation2 [shape = 'u8[2048]{0}', space=vmem, size = 0x800, scoped, tag = 'input window, operand 0, single buffered']
    #allocation3 [shape = 's32[1]{0}', space=sflag, size = 0x4, scoped, tag = 'scoped memory for tpu_custom_call.1']
    #allocation4 [shape = 's32[1]{0}', space=sflag, size = 0x4, scoped, tag = 'scoped memory for tpu_custom_call.1']
    #allocation5 [shape = 'u8[512]{0}', space=vmem, size = 0x400, scoped, tag = 'input window, operand 1, single buffered']
    #allocation6 [shape = 's32[1]{0}', space=sflag, size = 0x4, scoped, tag = 'scoped memory for tpu_custom_call.1']
    #allocation7 [shape = 'u8[2048]{0}', space=vmem, size = 0x800, scoped, tag = 'output window, operand 0, single buffered']
    %7 = vsyncpa [#allocation3], 0
    %8 = vsyncpa [#allocation6], 0
    %9 = vsyncpa [#allocation4], 0
    // Predicated region
    $region2: #{tpu_custom_call.1} parent=1 // pred_check
      _
    $region3: #{tpu_custom_call.1} parent=1 // pred_check_branch
      %11 = sbr.rel (0) target = $region5
    $region4: #{tpu_custom_call.1} parent=1 // pred_region
      %13 = vsyncadd [#allocation3], 0
      %s15 = sshll.u32 %s0, 4
      %s16 = int_to_ptr.hbm [resolvable:$true] %s15
      %s17 = sshll.u32 [#allocation2], 4
      %s18 = int_to_ptr.vmem [resolvable:$true] %s17
      %20 = dma.hbm_to_vmem [thread:$0]  %s16, 64, %s18, [#allocation3]
    $region5: #{tpu_custom_call.1} parent=1 // pred_fallthru
      _
    // Predicated region
    $region6: #{tpu_custom_call.1} parent=1 // pred_check
      _
    $region7: #{tpu_custom_call.1} parent=1 // pred_check_branch
      %22 = sbr.rel (0) target = $region9
    $region8: #{tpu_custom_call.1} parent=1 // pred_region
      %24 = vsyncadd [#allocation6], 0
      %s26 = sshll.u32 %s1, 4
      %s27 = int_to_ptr.hbm [resolvable:$true] %s26
      %s28 = sshll.u32 [#allocation5], 4
      %s29 = int_to_ptr.vmem [resolvable:$true] %s28
      %31 = dma.hbm_to_vmem [thread:$0]  %s27, 16, %s29, [#allocation6]
    $region9: #{tpu_custom_call.1} parent=1 // pred_fallthru
      _
    // Predicated region
    $region10: #{tpu_custom_call.1} parent=1 // pred_check
      _
    $region11: #{tpu_custom_call.1} parent=1 // pred_check_branch
      %33 = sbr.rel (0) target = $region13
    $region12: #{tpu_custom_call.1} parent=1 // pred_region
      %35 = dma.done [#allocation3], 64
    $region13: #{tpu_custom_call.1} parent=1 // pred_fallthru
      _
    // Predicated region
    $region14: #{tpu_custom_call.1} parent=1 // pred_check
      _
    $region15: #{tpu_custom_call.1} parent=1 // pred_check_branch
      %37 = sbr.rel (0) target = $region17
    $region16: #{tpu_custom_call.1} parent=1 // pred_region
      %39 = dma.done [#allocation6], 16
    $region17: #{tpu_custom_call.1} parent=1 // pred_fallthru
      _
    %v40 = vld [vmem:[#allocation2] sm:$0xf]
    %v41 = vld [vmem:[#allocation5] sm:$0x1]
    %v43 = vperm.slane %v41, 0
    %v45 = vmul.f32 %v40, %v43
    %46 = vst [vmem:[#allocation7] sm:$0xf] %v45
    // Predicated region
    $region18: #{tpu_custom_call.1} parent=1 // pred_check
      _
    $region19: #{tpu_custom_call.1} parent=1 // pred_check_branch
      %48 = sbr.rel (0) target = $region21
    $region20: #{tpu_custom_call.1} parent=1 // pred_region
      %50 = vsyncadd [#allocation4], 0
      %s52 = sshll.u32 [#allocation7], 4
      %s53 = int_to_ptr.vmem [resolvable:$true] %s52
      %s54 = sshll.u32 %s2, 4
      %s55 = int_to_ptr.hbm [resolvable:$true] %s54
      %57 = dma.vmem_to_hbm [thread:$0]  %s53, 64, %s55, [#allocation4]
    $region21: #{tpu_custom_call.1} parent=1 // pred_fallthru
      _
    // Predicated region
    $region22: #{tpu_custom_call.1} parent=1 // pred_check
      _
    $region23: #{tpu_custom_call.1} parent=1 // pred_check_branch
      %59 = sbr.rel (0) target = $region25
    $region24: #{tpu_custom_call.1} parent=1 // pred_region
      %61 = dma.done [#allocation4], 64
    $region25: #{tpu_custom_call.1} parent=1 // pred_fallthru
      _
    %62 = vsyncpa [#allocation3], 1
    %63 = vsyncpa [#allocation6], 1
    %64 = vsyncpa [#allocation4], 1

</llo_original>
